<compile_context>
chip_gen: v7x
topology: tpu7x:2x2x1
jax: 0.10.0
libtpu: 0.0.40
codegen_flags: <defaults>
</compile_context>

<pallas_src>
import math

import jax
import jax.numpy as jnp
from jax.experimental import pallas as pl
from jax.experimental.pallas import tpu as pltpu


# Each DMA chunk should be >= ~1 MiB so descriptor/sync overhead is negligible;
# cap the number of chunks so the semaphore array stays tiny.
_MIN_CHUNK_BYTES = 1 * 1024 * 1024
_MAX_CHUNKS = 8


def _chunk_rows(rows, cols, itemsize):
    """Split `rows` into up to _MAX_CHUNKS contiguous row ranges (>= ~1 MiB each)."""
    bytes_per_row = max(1, cols * itemsize)
    max_by_size = max(1, (rows * bytes_per_row) // _MIN_CHUNK_BYTES)
    n = int(min(_MAX_CHUNKS, rows, max_by_size))
    base, rem = divmod(rows, n)
    ranges, start = [], 0
    for i in range(n):
        size = base + (1 if i < rem else 0)
        ranges.append((start, size))
        start += size
    return ranges


def _make_hbm_copy_kernel(ranges):
    """Kernel: chunked HBM->HBM DMA identity copy (no VMEM / vreg round trip)."""

    def kernel(x_hbm, o_hbm, sems):
        copies = []
        # Start all chunk DMAs (lets multiple DMA engines run in parallel)...
        for idx, (start, size) in enumerate(ranges):
            cp = pltpu.make_async_copy(
                x_hbm.at[pl.ds(start, size), :],
                o_hbm.at[pl.ds(start, size), :],
                sems.at[idx],
            )
            cp.start()
            copies.append(cp)
        # ...then wait for all of them.
        for cp in copies:
            cp.wait()

    return kernel


def _dma_copy_2d(x2d):
    """HBM->HBM copy of a 2D array using chunked async DMAs."""
    rows, cols = x2d.shape
    itemsize = jnp.dtype(x2d.dtype).itemsize
    ranges = _chunk_rows(rows, cols, itemsize)
    total_bytes = rows * cols * itemsize

    return pl.pallas_call(
        _make_hbm_copy_kernel(ranges),
        out_shape=jax.ShapeDtypeStruct((rows, cols), x2d.dtype),
        in_specs=[pl.BlockSpec(memory_space=pl.ANY)],
        out_specs=pl.BlockSpec(memory_space=pl.ANY),
        scratch_shapes=[pltpu.SemaphoreType.DMA((len(ranges),))],
        cost_estimate=pl.CostEstimate(
            flops=0, transcendentals=0, bytes_accessed=2 * total_bytes
        ),
    )(x2d)


def _pick_slab_shape(total, natural_last):
    """2D shape for the copy. Wide rows first (fewer DMA descriptors); DMA does
    not require (8,128) alignment, so any factorization is legal."""
    for c in (8192, 4096, 2048, 1024, 512, 256, 128):
        if total % c == 0:
            return (total // c, c)
    if natural_last and total % natural_last == 0 and total // natural_last > 1:
        return (total // natural_last, natural_last)
    # Fully unaligned: one contiguous row, single DMA.
    return (1, total)


def pallas_flatten(x, start_dim=1, end_dim=-1, copy=False):
    ndim = x.ndim
    sd = start_dim if start_dim >= 0 else start_dim + ndim
    ed = end_dim if end_dim >= 0 else end_dim + ndim
    assert 0 <= sd <= ed < ndim, (sd, ed)

    flat = math.prod(x.shape[sd:ed + 1])
    out_shape = x.shape[:sd] + (flat,) + x.shape[ed + 1:]

    # Row-major collapse — identical semantics to torch.flatten / x.view(...).
    x2 = jnp.reshape(x, out_shape)

    if not copy or x2.size == 0:
        # Flatten is a metadata-only op: no data movement, no kernel needed.
        return x2

    total = x2.size
    rows, cols = _pick_slab_shape(total, out_shape[-1])
    slab = jnp.reshape(x2, (rows, cols))  # free bitcast for row-major layouts
    out2d = _dma_copy_2d(slab)
    return jnp.reshape(out2d, out_shape)


class Flatten:
    """JAX/Pallas port of the PyTorch Flatten module (no parameters)."""

    def __init__(self, start_dim=1, end_dim=-1, copy=False):
        self.start_dim = start_dim
        self.end_dim = end_dim
        self.copy = copy

    def __call__(self, x):
        return pallas_flatten(x, self.start_dim, self.end_dim, copy=self.copy)


if __name__ == "__main__":
    key = jax.random.PRNGKey(0)
    # Small NCHW input consistent with a ResNet feature map entering Flatten:
    # batch=2, channels=4, spatial=16x16.
    x = jax.random.normal(key, (2, 4, 16, 16), dtype=jnp.float32)

    # Reference semantics: torch.flatten(x, 1, -1) == row-major reshape.
    y_ref = x.reshape(x.shape[0], -1)

    # 1) Default (fast) path: metadata-only reshape, zero HBM traffic.
    mod = Flatten(start_dim=1, end_dim=-1)
    y_fast = jax.block_until_ready(mod(x))
    assert y_fast.shape == (2, 4 * 16 * 16), y_fast.shape
    assert y_fast.dtype == x.dtype
    assert bool(jnp.array_equal(y_fast, y_ref)), "mismatch (metadata path)"

    # 2) Explicit-copy path: exercises the chunked HBM->HBM DMA copy kernel.
    mod_copy = Flatten(start_dim=1, end_dim=-1, copy=True)
    y_copy = jax.block_until_ready(mod_copy(x))
    assert y_copy.shape == (2, 4 * 16 * 16), y_copy.shape
    assert y_copy.dtype == x.dtype
    assert bool(jnp.array_equal(y_copy, y_ref)), "mismatch (DMA copy path)"

    # 3) Unaligned-total sanity check (exercises the non-128-divisible slab path).
    x_odd = jax.random.normal(key, (2, 3, 5, 7), dtype=jnp.float32)
    y_odd = jax.block_until_ready(pallas_flatten(x_odd, 1, -1, copy=True))
    assert bool(jnp.array_equal(y_odd, x_odd.reshape(2, -1))), "mismatch (unaligned)"

    print("KERNEL_OK")
</pallas_src>

<mosaic_0001>
module attributes {stable_mosaic.version = 11 : i64} {
  func.func @kernel(%arg0: memref<1x2048xf32, #tpu.memory_space<any>>, %arg1: memref<1x2048xf32, #tpu.memory_space<any>>, %arg2: memref<1x!tpu.dma_semaphore, #tpu.memory_space<semaphore_mem>>) attributes {dimension_semantics = [], scalar_prefetch = 0 : i64, scratch_operands = 1 : i64, tpu.core_type = #tpu.core_type<tc>} {
    %c0_i32 = arith.constant 0 : i32
    %c0_i32_0 = arith.constant 0 : i32
    %c0_i32_1 = arith.constant 0 : i32
    %0 = tpu.memref_slice %arg0[%c0_i32_0, %c0_i32_1] : memref<1x2048xf32, #tpu.memory_space<any>> -> memref<1x2048xf32, #tpu.memory_space<any>>
    %c0_i32_2 = arith.constant 0 : i32
    %c0_i32_3 = arith.constant 0 : i32
    %1 = tpu.memref_slice %arg1[%c0_i32_2, %c0_i32_3] : memref<1x2048xf32, #tpu.memory_space<any>> -> memref<1x2048xf32, #tpu.memory_space<any>>
    %2 = tpu.memref_slice %arg2[%c0_i32] : memref<1x!tpu.dma_semaphore, #tpu.memory_space<semaphore_mem>> -> memref<1x!tpu.dma_semaphore, #tpu.memory_space<semaphore_mem>>
    %3 = tpu.memref_squeeze %2 : memref<1x!tpu.dma_semaphore, #tpu.memory_space<semaphore_mem>> -> memref<!tpu.dma_semaphore, #tpu.memory_space<semaphore_mem>>
    tpu.enqueue_dma source(%0 : memref<1x2048xf32, #tpu.memory_space<any>>) target(%1 : memref<1x2048xf32, #tpu.memory_space<any>>) target_semaphore(%3 : memref<!tpu.dma_semaphore, #tpu.memory_space<semaphore_mem>>)
    %c0_i32_4 = arith.constant 0 : i32
    %c0_i32_5 = arith.constant 0 : i32
    %c0_i32_6 = arith.constant 0 : i32
    %4 = tpu.memref_slice %arg0[%c0_i32_5, %c0_i32_6] : memref<1x2048xf32, #tpu.memory_space<any>> -> memref<1x2048xf32, #tpu.memory_space<any>>
    %c0_i32_7 = arith.constant 0 : i32
    %c0_i32_8 = arith.constant 0 : i32
    %5 = tpu.memref_slice %arg1[%c0_i32_7, %c0_i32_8] : memref<1x2048xf32, #tpu.memory_space<any>> -> memref<1x2048xf32, #tpu.memory_space<any>>
    %6 = tpu.memref_slice %arg2[%c0_i32_4] : memref<1x!tpu.dma_semaphore, #tpu.memory_space<semaphore_mem>> -> memref<1x!tpu.dma_semaphore, #tpu.memory_space<semaphore_mem>>
    %7 = tpu.memref_squeeze %6 : memref<1x!tpu.dma_semaphore, #tpu.memory_space<semaphore_mem>> -> memref<!tpu.dma_semaphore, #tpu.memory_space<semaphore_mem>>
    tpu.wait_dma2 semaphore(%7 : memref<!tpu.dma_semaphore, #tpu.memory_space<semaphore_mem>>) src(%4 : memref<1x2048xf32, #tpu.memory_space<any>>) dst(%5 : memref<1x2048xf32, #tpu.memory_space<any>>)
    return
  }
}

</mosaic_0001>

<llo_original>
// kernel: tpu_custom_call.1
$region0: #{tpu_custom_call.1}
  #allocation0 [shape = 'u32[]', space=smem, size = 0x4, offset = 0x4, fixed_abs, tag = 'smem constant byte address 0x4 - core index']
  #allocation1 [shape = 'u32[144,128]{1,0:T(1,128)}', space=vmem, size = 0x12000, scoped, tag = 'internal scratch']
  #allocation2 [shape = 's32[1]{0}', space=sflag, size = 0x4, scoped, tag = 'scratch operand']
  #allocation3 [shape = 's32[]', space=sflag, size = 0x4, offset = 0, fixed_abs, tag = 'sflag constant byte address 0x0 - dummy sync flag']
  #allocation4 [shape = 'u32[0]{0}', space=smem, size = 0, offset = 0, fixed_abs, tag = 'smem constant byte address 0x0 - null']
  %s0 = inlined_call_operand.hbm [shape: f32[1,2048], index: 0, kind: input, shape index: {}]
  %s1 = inlined_call_operand.hbm [shape: f32[1,2048], index: 1, kind: output, shape index: {}]
  %s2 = sld [smem:[#allocation0]]
  $region2: #{tpu_custom_call.1} parent=0
    _
  %s4 = ssub.s32 1, %s2
  %s5 = scalar_select 0, %s4, %s2
  %s7 = sshll.u32 1, 14
  %s8 = sxor.u32 4294967295, %s7
  %s11 = sshll.u32 3, 24
  %s12 = sxor.u32 4294967295, %s11
  %s13 = sand.u32 0, %s12
  %s15 = sor.u32 %s13, 0
  %18 = dma.general %s0, 256, %s1, [#allocation2], [#allocation3], [#allocation4], %s15, 0
  %s19 = smul.u32 1, 16
  %s20 = sshll.u32 %s19, 4
  %21 = dma.done [#allocation2], %s20
  %22 = vsyncmov [#allocation2]
  %s23 = vpop.sfrf %22
  %p24 = scmp.eq.s32.totalorder %s23, 0
  %p25 = pneg %p24
  %27 = shalt.err (%p25)

</llo_original>
